<compile_context>
chip_gen: v5e
topology: v5e:2x2
jax: 0.10.0
libtpu: 0.0.40
codegen_flags: <defaults>
</compile_context>

<pallas_src>
import jax
import jax.numpy as jnp
from jax.experimental import pallas as pl
from jax.experimental.pallas import tpu as pltpu

LANE = 128
DEFAULT_MAX_BLOCK_ROWS = 4096   # 4096 x 128 f32 = 2 MiB per streamed block
NUM_CORE_SPLITS = 2             # leading "parallel" grid axis (v7x megacore)


def _penalty(d, mode, norm):
    if mode == "eq":
        v = jnp.abs(d)
    elif mode == "lt":
        v = jnp.maximum(d, 0.0)
    elif mode == "gt":
        v = jnp.maximum(-d, 0.0)
    else:
        raise ValueError(f"unknown comparator mode: {mode}")
    if norm == 2:
        v = v * v
    return v


def _make_kernel(mode, norm, operand_kind, block_rows, blocks_per_split,
                 n_true, needs_mask):
    """operand_kind: 'tt' (tensor,tensor), 'ts' (tensor, SMEM scalar rhs),
    'st' (SMEM scalar lhs, tensor)."""

    def kernel(a_ref, b_ref, o_ref, acc_ref):
        c = pl.program_id(0)   # core-split axis ("parallel")
        i = pl.program_id(1)   # reduction axis ("arbitrary")

        @pl.when(i == 0)
        def _init():
            acc_ref[...] = jnp.zeros_like(acc_ref)

        if operand_kind == "tt":
            d = a_ref[...].astype(jnp.float32) - b_ref[...].astype(jnp.float32)
        else:
            t = a_ref[...].astype(jnp.float32)
            s = b_ref[0]                       # f32 scalar living in SMEM
            d = (t - s) if operand_kind == "ts" else (s - t)

        v = _penalty(d, mode, norm)

        if needs_mask:
            # Mask out (a) garbage rows of blocks overhanging the array and
            # (b) the zero-padded lane tail of the last valid row.
            base = (c * blocks_per_split + i) * (block_rows * LANE)
            row = jax.lax.broadcasted_iota(jnp.int32, (block_rows, LANE), 0)
            lane = jax.lax.broadcasted_iota(jnp.int32, (block_rows, LANE), 1)
            idx_in_block = row * LANE + lane
            v = jnp.where(idx_in_block < (n_true - base), v, 0.0)

        # Lane-wise accumulation: pure VPU vreg adds, no per-step XLU reduce.
        acc_ref[...] += v

        @pl.when(i == pl.num_programs(1) - 1)
        def _finalize():
            # Single cross-sublane reduce per core; wrapper sums the partials.
            o_ref[...] = jnp.sum(acc_ref[...], axis=0).reshape(1, 1, LANE)

    return kernel


def _prep_stream(x):
    """Flatten to (rows, LANE) tiles keeping a native streaming dtype."""
    if x.dtype != jnp.float32 and x.dtype != jnp.bfloat16:
        x = x.astype(jnp.float32)
    flat = x.reshape(-1)
    rem = flat.size % LANE
    if rem:  # pad only the small lane tail (free reshape when already aligned)
        flat = jnp.pad(flat, (0, LANE - rem))
    return flat.reshape(-1, LANE)


def constraint_violation(left, right, *, mode, norm=1, weight=1.0,
                         max_block_rows=DEFAULT_MAX_BLOCK_ROWS):
    """Pallas equivalent of weight * comparator(left, right). Returns 0-d f32."""
    if norm not in (1, 2):
        raise ValueError(f"norm must be 1 or 2, got {norm}")

    left = jnp.asarray(left)
    right = jnp.asarray(right)
    left_scalar = left.size == 1
    right_scalar = right.size == 1

    if left_scalar and right_scalar:
        # Degenerate scalar-vs-scalar constraint: no kernel needed.
        d = (left.astype(jnp.float32).reshape(())
             - right.astype(jnp.float32).reshape(()))
        return jnp.asarray(weight, jnp.float32) * _penalty(d, mode, norm)

    if left_scalar or right_scalar:
        if right_scalar:
            tensor, scalar, kind = left, right, "ts"
        else:
            tensor, scalar, kind = right, left, "st"
        n_true = int(tensor.size)
        tiles = _prep_stream(tensor)
        operands = (tiles, scalar.astype(jnp.float32).reshape(1))
        bytes_streamed = tiles.size * tiles.dtype.itemsize + 4
    else:
        if left.shape != right.shape:
            left, right = jnp.broadcast_arrays(left, right)
        kind = "tt"
        n_true = int(left.size)
        l_tiles = _prep_stream(left)
        r_tiles = _prep_stream(right)
        operands = (l_tiles, r_tiles)
        bytes_streamed = (l_tiles.size * l_tiles.dtype.itemsize
                          + r_tiles.size * r_tiles.dtype.itemsize)

    rows = operands[0].shape[0]
    block_rows = min(int(max_block_rows), rows)   # multiple of 8 or == rows
    num_blocks = pl.cdiv(rows, block_rows)
    num_splits = NUM_CORE_SPLITS if num_blocks >= NUM_CORE_SPLITS else 1
    blocks_per_split = pl.cdiv(num_blocks, num_splits)
    needs_mask = (num_splits * blocks_per_split * block_rows * LANE) != n_true

    if num_splits * blocks_per_split > num_blocks:
        # Some logical blocks overhang the array; clamp the DMA to the last
        # real block (its contribution is fully masked out in-kernel).
        def row_map(c, i):
            return (jnp.minimum(c * blocks_per_split + i, num_blocks - 1), 0)
    else:
        def row_map(c, i):
            return (c * blocks_per_split + i, 0)

    if kind == "tt":
        in_specs = [pl.BlockSpec((block_rows, LANE), row_map),
                    pl.BlockSpec((block_rows, LANE), row_map)]
    else:
        in_specs = [pl.BlockSpec((block_rows, LANE), row_map),
                    pl.BlockSpec(memory_space=pltpu.MemorySpace.SMEM)]

    kernel = _make_kernel(mode, norm, kind, block_rows, blocks_per_split,
                          n_true, needs_mask)

    partials = pl.pallas_call(
        kernel,
        out_shape=jax.ShapeDtypeStruct((num_splits, 1, LANE), jnp.float32),
        grid_spec=pltpu.PrefetchScalarGridSpec(
            num_scalar_prefetch=0,
            grid=(num_splits, blocks_per_split),
            in_specs=in_specs,
            out_specs=pl.BlockSpec((1, 1, LANE), lambda c, i: (c, 0, 0)),
            scratch_shapes=[pltpu.VMEM((block_rows, LANE), jnp.float32)],
        ),
        compiler_params=pltpu.CompilerParams(
            dimension_semantics=("parallel", "arbitrary")),
        cost_estimate=pl.CostEstimate(
            flops=3 * n_true, transcendentals=0,
            bytes_accessed=int(bytes_streamed) + num_splits * LANE * 4),
    )(*operands)

    total = jnp.sum(partials)
    return jnp.asarray(weight, jnp.float32) * total / jnp.float32(n_true)


class Constraint:
    """Minimal JAX/Pallas mirror of neuromancer.constraint.Constraint.

    `left` / `right` may be a string key (looked up in the input dict, like a
    base Variable) or a numeric / array constant.
    """

    def __init__(self, left, right, mode, norm=1, weight=1.0, name=None):
        self.left = left
        self.right = right
        self.mode = mode            # "eq" | "lt" | "gt"
        self.norm = norm            # 1 or 2
        self.weight = weight
        self.name = name or f"{left}_{mode}_{right}"

    def _resolve(self, side, input_dict):
        if isinstance(side, str):
            return input_dict[side]
        return side

    def forward(self, input_dict):
        l = self._resolve(self.left, input_dict)
        r = self._resolve(self.right, input_dict)
        val = constraint_violation(
            l, r, mode=self.mode, norm=self.norm, weight=self.weight)
        return {self.name: val}

    __call__ = forward


def _reference(left, right, mode, norm, weight):
    left = jnp.asarray(left, jnp.float32)
    right = jnp.asarray(right, jnp.float32)
    left, right = jnp.broadcast_arrays(left, right)
    d = left - right
    if mode == "eq":
        v = jnp.abs(d)
    elif mode == "lt":
        v = jnp.maximum(d, 0.0)
    else:
        v = jnp.maximum(-d, 0.0)
    if norm == 2:
        v = v * v
    return weight * jnp.mean(v)


if __name__ == "__main__":
    key = jax.random.PRNGKey(0)
    kx, ky, kz, kw = jax.random.split(key, 4)

    x = jax.random.normal(kx, (2, 4, 16, 16), dtype=jnp.float32)
    y = jax.random.normal(ky, (2, 4, 16, 16), dtype=jnp.float32)
    z = jax.random.normal(kz, (3, 50), dtype=jnp.float32)   # size % 128 != 0
    data = {
        "x": x, "y": y, "z": z,
        "xb": x.astype(jnp.bfloat16), "yb": y.astype(jnp.bfloat16),
    }

    failures = []

    # Constraint-level cases (default large-block path).
    cases = [
        ("x", "y", "eq", 1, 1.0),    # Variable('x') == Variable('y')
        ("x", "y", "eq", 2, 2.0),    # (x == y)^2 * 2.0
        ("x", 0.5, "lt", 1, 1.0),    # x < 0.5          (SMEM scalar rhs)
        ("x", 0.5, "lt", 2, 3.0),    # (x < 0.5)^2 * 3.0
        ("x", -0.5, "gt", 1, 1.0),   # x > -0.5
        ("x", "y", "gt", 2, 0.7),    # (x > y)^2 * 0.7
        ("xb", "yb", "eq", 2, 1.0),  # bf16 operands streamed natively
        ("z", 0.25, "gt", 1, 1.5),   # ragged size -> in-kernel tail mask
        ("z", "z", "eq", 2, 1.0),    # trivially zero
        (0.3, "x", "lt", 1, 1.0),    # scalar on the left
        (0.7, 0.2, "lt", 1, 1.0),    # scalar-vs-scalar degenerate path
    ]
    for left, right, mode, norm, weight in cases:
        con = Constraint(left, right, mode, norm=norm, weight=weight)
        got = jax.block_until_ready(con(data)[con.name])
        l = data[left] if isinstance(left, str) else left
        r = data[right] if isinstance(right, str) else right
        want = _reference(l, r, mode, norm, weight)
        if not jnp.allclose(got, want, rtol=1e-5, atol=1e-6):
            failures.append(f"{con.name}: got {got}, want {want}")

    # Stress the multi-block / core-split / clamped-index / masking paths on
    # small data by forcing small block sizes through the wrapper.
    big = jax.random.normal(kw, (40, 1000), dtype=jnp.float32)
    stress = [
        dict(left=big, right=big * 0.5, mode="eq", norm=2, weight=1.3,
             max_block_rows=64),                        # clamp + mask, 2 ops
        dict(left=big, right=0.2, mode="lt", norm=1, weight=1.0,
             max_block_rows=64),                        # SMEM scalar + clamp
        dict(left=-0.1, right=big, mode="gt", norm=2, weight=0.5,
             max_block_rows=40),                        # scalar lhs + mask
    ]
    for idx, kw_args in enumerate(stress):
        got = jax.block_until_ready(constraint_violation(
            kw_args["left"], kw_args["right"], mode=kw_args["mode"],
            norm=kw_args["norm"], weight=kw_args["weight"],
            max_block_rows=kw_args["max_block_rows"]))
        want = _reference(kw_args["left"], kw_args["right"], kw_args["mode"],
                          kw_args["norm"], kw_args["weight"])
        if not jnp.allclose(got, want, rtol=1e-5, atol=1e-6):
            failures.append(f"stress[{idx}]: got {got}, want {want}")

    if failures:
        for f in failures:
            print("MISMATCH", f)
    else:
        print("KERNEL_OK")
</pallas_src>

<mosaic_0001>
module attributes {stable_mosaic.version = 11 : i64} {
  func.func @kernel(%arg0: i32, %arg1: i32, %arg2: memref<16x128xf32, #tpu.memory_space<vmem>>, %arg3: memref<16x128xf32, #tpu.memory_space<vmem>>, %arg4: memref<1x1x128xf32, #tpu.memory_space<vmem>>, %arg5: memref<16x128xf32, #tpu.memory_space<vmem>>) attributes {dimension_semantics = [#tpu.dimension_semantics<parallel>, #tpu.dimension_semantics<arbitrary>], iteration_bounds = array<i64: 1, 1>, scalar_prefetch = 0 : i64, scratch_operands = 1 : i64, tpu.core_type = #tpu.core_type<tc>, window_params = [{transform_indices = @transform_0, window_bounds = array<i64: 16, 128>}, {transform_indices = @transform_1, window_bounds = array<i64: 16, 128>}, {transform_indices = @transform_2, window_bounds = array<i64: 1, 1, 128>}]} {
    %c0_i32 = arith.constant 0 : i32
    %0 = arith.cmpi eq, %arg1, %c0_i32 : i32
    %1 = arith.extui %0 : i1 to i32
    %c0_i32_0 = arith.constant 0 : i32
    %2 = arith.cmpi ne, %1, %c0_i32_0 : i32
    scf.if %2 {
      %cst = arith.constant 0.000000e+00 : f32
      %13 = vector.broadcast %cst : f32 to vector<16x128xf32>
      %c0_10 = arith.constant 0 : index
      %c0_11 = arith.constant 0 : index
      %14 = vector.load %arg5[%c0_10, %c0_11] : memref<16x128xf32, #tpu.memory_space<vmem>>, vector<16x128xf32>
      tpu.vector_store %arg5[%c0_10, %c0_11], %13 {strides = array<i32>} : memref<16x128xf32, #tpu.memory_space<vmem>>, vector<16x128xf32>,
    } else {
    }
    %c0 = arith.constant 0 : index
    %c0_1 = arith.constant 0 : index
    %3 = vector.load %arg2[%c0, %c0_1] : memref<16x128xf32, #tpu.memory_space<vmem>>, vector<16x128xf32>
    %c0_2 = arith.constant 0 : index
    %c0_3 = arith.constant 0 : index
    %4 = vector.load %arg3[%c0_2, %c0_3] : memref<16x128xf32, #tpu.memory_space<vmem>>, vector<16x128xf32>
    %5 = arith.subf %3, %4 : vector<16x128xf32>
    %6 = math.absf %5 : vector<16x128xf32>
    %c0_4 = arith.constant 0 : index
    %c0_5 = arith.constant 0 : index
    %7 = vector.load %arg5[%c0_4, %c0_5] : memref<16x128xf32, #tpu.memory_space<vmem>>, vector<16x128xf32>
    %8 = arith.addf %7, %6 : vector<16x128xf32>
    %c0_6 = arith.constant 0 : index
    %c0_7 = arith.constant 0 : index
    %9 = vector.load %arg5[%c0_6, %c0_7] : memref<16x128xf32, #tpu.memory_space<vmem>>, vector<16x128xf32>
    tpu.vector_store %arg5[%c0_6, %c0_7], %8 {strides = array<i32>} : memref<16x128xf32, #tpu.memory_space<vmem>>, vector<16x128xf32>,
    %c0_i32_8 = arith.constant 0 : i32
    %10 = arith.cmpi eq, %arg1, %c0_i32_8 : i32
    %11 = arith.extui %10 : i1 to i32
    %c0_i32_9 = arith.constant 0 : i32
    %12 = arith.cmpi ne, %11, %c0_i32_9 : i32
    scf.if %12 {
      %c0_10 = arith.constant 0 : index
      %c0_11 = arith.constant 0 : index
      %13 = vector.load %arg5[%c0_10, %c0_11] : memref<16x128xf32, #tpu.memory_space<vmem>>, vector<16x128xf32>
      %cst = arith.constant dense<0.000000e+00> : vector<128xf32>
      %14 = vector.multi_reduction <add>, %13, %cst [0] : vector<16x128xf32> to vector<128xf32>
      %15 = vector.shape_cast %14 : vector<128xf32> to vector<1x1x128xf32>
      %c0_12 = arith.constant 0 : index
      %c0_13 = arith.constant 0 : index
      %c0_14 = arith.constant 0 : index
      %16 = vector.load %arg4[%c0_12, %c0_13, %c0_14] : memref<1x1x128xf32, #tpu.memory_space<vmem>>, vector<1x1x128xf32>
      tpu.vector_store %arg4[%c0_12, %c0_13, %c0_14], %15 {strides = array<i32>} : memref<1x1x128xf32, #tpu.memory_space<vmem>>, vector<1x1x128xf32>,
    } else {
    }
    return
  }
  func.func @transform_0(%arg0: i32, %arg1: i32) -> (i32, i32) {
    %c1_i32 = arith.constant 1 : i32
    %0 = arith.muli %arg0, %c1_i32 : i32
    %1 = arith.addi %0, %arg1 : i32
    %c0_i32 = arith.constant 0 : i32
    %c0_i32_0 = arith.constant 0 : i32
    return %1, %c0_i32 : i32, i32
  }
  func.func @transform_1(%arg0: i32, %arg1: i32) -> (i32, i32) {
    %c1_i32 = arith.constant 1 : i32
    %0 = arith.muli %arg0, %c1_i32 : i32
    %1 = arith.addi %0, %arg1 : i32
    %c0_i32 = arith.constant 0 : i32
    %c0_i32_0 = arith.constant 0 : i32
    return %1, %c0_i32 : i32, i32
  }
  func.func @transform_2(%arg0: i32, %arg1: i32) -> (i32, i32, i32) {
    %c0_i32 = arith.constant 0 : i32
    %c0_i32_0 = arith.constant 0 : i32
    %c0_i32_1 = arith.constant 0 : i32
    return %arg0, %c0_i32, %c0_i32_0 : i32, i32, i32
  }
}

</mosaic_0001>

<llo_original>
// kernel: tpu_custom_call.1
$region0: #{tpu_custom_call.1}
  #allocation0 [shape = 'u32[]', space=smem, size = 0x4, offset = 0x4, fixed_abs, tag = 'smem constant byte address 0x4 - core index']
  #allocation1 [shape = 'u32[72,128]{1,0:T(1,128)}', space=vmem, size = 0x9000, scoped, tag = 'internal scratch']
  #allocation2 [shape = 'f32[16,128]{1,0:T(8,128)}', space=vmem, size = 0x2000, scoped, tag = 'scratch operand']
  %s0 = inlined_call_operand.hbm [shape: f32[16,128], index: 0, kind: input, shape index: {}]
  %s1 = inlined_call_operand.hbm [shape: f32[16,128], index: 1, kind: input, shape index: {}]
  %s2 = inlined_call_operand.hbm [shape: f32[1,1,128], index: 2, kind: output, shape index: {}]
  %s3 = sld [smem:[#allocation0]]
  $region34: #{tpu_custom_call.1} parent=0
    _
  %s5 = ssub.s32 1, %s3
  %s6 = scalar_select 0, %s5, %s3
  $region1: #{tpu_custom_call.1} parent=0
    #allocation3 [shape = 'u8[8192]{0}', space=vmem, size = 0x2000, scoped, tag = 'input window, operand 0, single buffered']
    #allocation4 [shape = 's32[1]{0}', space=sflag, size = 0x4, scoped, tag = 'scoped memory for tpu_custom_call.1']
    #allocation5 [shape = 's32[1]{0}', space=sflag, size = 0x4, scoped, tag = 'scoped memory for tpu_custom_call.1']
    #allocation6 [shape = 'u8[8192]{0}', space=vmem, size = 0x2000, scoped, tag = 'input window, operand 1, single buffered']
    #allocation7 [shape = 's32[1]{0}', space=sflag, size = 0x4, scoped, tag = 'scoped memory for tpu_custom_call.1']
    #allocation8 [shape = 'u8[512]{0}', space=vmem, size = 0x400, scoped, tag = 'output window, operand 0, single buffered']
    %7 = vsyncpa [#allocation4], 0
    %8 = vsyncpa [#allocation7], 0
    %9 = vsyncpa [#allocation5], 0
    // Predicated region
    $region2: #{tpu_custom_call.1} parent=1 // pred_check
      _
    $region3: #{tpu_custom_call.1} parent=1 // pred_check_branch
      %11 = sbr.rel (0) target = $region5
    $region4: #{tpu_custom_call.1} parent=1 // pred_region
      %s12 = sadd.s32 0, 0
      %s13 = smul.u32 2, %s12
      %15 = vsyncadd [#allocation4], 0
      %s16 = smul.addr %s13, 8
      %s17 = scalar_lea.hbm %s0, %s16
      %s18 = sshll.u32 %s17, 4
      %s19 = int_to_ptr.hbm [resolvable:$true] %s18
      %s20 = sshll.u32 [#allocation3], 4
      %s21 = int_to_ptr.vmem [resolvable:$true] %s20
      %26 = dma.hbm_to_vmem [thread:$0]  %s19, 256, %s21, [#allocation4], 128, 128, 8
    $region5: #{tpu_custom_call.1} parent=1 // pred_fallthru
      _
    // Predicated region
    $region6: #{tpu_custom_call.1} parent=1 // pred_check
      _
    $region7: #{tpu_custom_call.1} parent=1 // pred_check_branch
      %28 = sbr.rel (0) target = $region9
    $region8: #{tpu_custom_call.1} parent=1 // pred_region
      %s29 = sadd.s32 0, 0
      %s30 = smul.u32 2, %s29
      %32 = vsyncadd [#allocation7], 0
      %s33 = smul.addr %s30, 8
      %s34 = scalar_lea.hbm %s1, %s33
      %s35 = sshll.u32 %s34, 4
      %s36 = int_to_ptr.hbm [resolvable:$true] %s35
      %s37 = sshll.u32 [#allocation6], 4
      %s38 = int_to_ptr.vmem [resolvable:$true] %s37
      %43 = dma.hbm_to_vmem [thread:$0]  %s36, 256, %s38, [#allocation7], 128, 128, 8
    $region9: #{tpu_custom_call.1} parent=1 // pred_fallthru
      _
    // Predicated region
    $region10: #{tpu_custom_call.1} parent=1 // pred_check
      _
    $region11: #{tpu_custom_call.1} parent=1 // pred_check_branch
      %45 = sbr.rel (0) target = $region13
    $region12: #{tpu_custom_call.1} parent=1 // pred_region
      %47 = dma.done [#allocation4], 256
    $region13: #{tpu_custom_call.1} parent=1 // pred_fallthru
      _
    // Predicated region
    $region14: #{tpu_custom_call.1} parent=1 // pred_check
      _
    $region15: #{tpu_custom_call.1} parent=1 // pred_check_branch
      %49 = sbr.rel (0) target = $region17
    $region16: #{tpu_custom_call.1} parent=1 // pred_region
      %51 = dma.done [#allocation7], 256
    $region17: #{tpu_custom_call.1} parent=1 // pred_fallthru
      _
    %s52 = sadd.s32 0, 0
    %s53 = smul.u32 2, %s52
    %s54 = sadd.s32 0, 0
    %s55 = smul.u32 2, %s54
    %p56 = scmp.eq.s32.totalorder 0, 0
    // Predicated region
    $region18: #{tpu_custom_call.1} parent=1 // pred_check
      %p57 = pneg %p56
    $region19: #{tpu_custom_call.1} parent=1 // pred_check_branch
      %59 = sbr.rel (%p57) target = $region21
    $region20: #{tpu_custom_call.1} parent=1 // pred_region
      %60 = vst [vmem:[#allocation2] sm:$0xff] 0.0
      %61 = vst [vmem:[#allocation2 + $0x8] sm:$0xff] 0.0
    $region21: #{tpu_custom_call.1} parent=1 // pred_fallthru
      _
    %v62 = vld [vmem:[#allocation3] sm:$0xff]
    %v63 = vld [vmem:[#allocation3 + $0x8] sm:$0xff]
    %v64 = vld [vmem:[#allocation6] sm:$0xff]
    %v65 = vld [vmem:[#allocation6 + $0x8] sm:$0xff]
    %v66 = vsub.f32 %v62, %v64
    %v67 = vsub.f32 %v63, %v65
    %v68 = vand.u32 2147483647, %v66
    %v69 = vand.u32 2147483647, %v67
    %v70 = vld [vmem:[#allocation2] sm:$0xff]
    %v71 = vld [vmem:[#allocation2 + $0x8] sm:$0xff]
    %v72 = vadd.f32 %v70, %v68
    %v73 = vadd.f32 %v71, %v69
    %74 = vst [vmem:[#allocation2] sm:$0xff] %v72
    %75 = vst [vmem:[#allocation2 + $0x8] sm:$0xff] %v73
    // Predicated region
    $region22: #{tpu_custom_call.1} parent=1 // pred_check
      %p76 = pneg %p56
    $region23: #{tpu_custom_call.1} parent=1 // pred_check_branch
      %78 = sbr.rel (%p76) target = $region25
    $region24: #{tpu_custom_call.1} parent=1 // pred_region
      %v79 = vld [vmem:[#allocation2] sm:$0xff]
      %v80 = vld [vmem:[#allocation2 + $0x8] sm:$0xff]
      %v81 = vadd.f32 %v79, %v80
      %v82 = vrot.slane %v81, 4
      %v83 = vadd.f32 %v81, %v82
      %v84 = vrot.slane %v83, 2
      %v85 = vadd.f32 %v83, %v84
      %v86 = vrot.slane %v85, 1
      %v87 = vadd.f32 %v85, %v86
      %88 = vst [vmem:[#allocation8] sm:$0x1] %v87
    $region25: #{tpu_custom_call.1} parent=1 // pred_fallthru
      _
    // Predicated region
    $region26: #{tpu_custom_call.1} parent=1 // pred_check
      _
    $region27: #{tpu_custom_call.1} parent=1 // pred_check_branch
      %90 = sbr.rel (0) target = $region29
    $region28: #{tpu_custom_call.1} parent=1 // pred_region
      %92 = vsyncadd [#allocation5], 0
      %s94 = sshll.u32 [#allocation8], 4
      %s95 = int_to_ptr.vmem [resolvable:$true] %s94
      %s96 = sshll.u32 %s2, 4
      %s97 = int_to_ptr.hbm [resolvable:$true] %s96
      %99 = dma.vmem_to_hbm [thread:$0]  %s95, 16, %s97, [#allocation5]
    $region29: #{tpu_custom_call.1} parent=1 // pred_fallthru
      _
    // Predicated region
    $region30: #{tpu_custom_call.1} parent=1 // pred_check
      _
    $region31: #{tpu_custom_call.1} parent=1 // pred_check_branch
      %101 = sbr.rel (0) target = $region33
    $region32: #{tpu_custom_call.1} parent=1 // pred_region
      %103 = dma.done [#allocation5], 16
    $region33: #{tpu_custom_call.1} parent=1 // pred_fallthru
      _
    %104 = vsyncpa [#allocation4], 1
    %105 = vsyncpa [#allocation7], 1
    %106 = vsyncpa [#allocation5], 1

</llo_original>
